<compile_context>
chip_gen: v7x
topology: tpu7x:2x2x1
jax: 0.10.0
libtpu: 0.0.40
codegen_flags: <defaults>
</compile_context>

<pallas_src>
import math

import jax
import jax.numpy as jnp
from jax.experimental import pallas as pl
from jax.experimental.pallas import tpu as pltpu

_LANE = 128
_SUBLANE = 8
_MAX_FEAT_TILE = 16 * 1024              # lane-dense feature tile cap (elements)
_VMEM_BUDGET_BYTES = 16 * 1024 * 1024   # budget for all live block copies
_VMEM_LIMIT_BYTES = 32 * 1024 * 1024    # scoped VMEM limit (safe on v5e/v6e/v7x)


def _drop_path_kernel(scale_ref, x_ref, o_ref):
    # Per-sample scale (TB, 1) broadcast over the lane-dense feature tile
    # (TB, TF).  Multiply in the native dtype (no f32 upcast temporary).
    o_ref[...] = x_ref[...] * scale_ref[...]


def _choose_tiles(batch, feat, itemsize, vmem_budget_bytes=_VMEM_BUDGET_BYTES):
    """Pick (tb, tf) block sizes for the (B, F) streaming multiply."""
    # Feature tile: multiple of 128 when F is large (last partial block is
    # masked automatically); full-extent block when F is small/ragged.
    tf = min(feat, _MAX_FEAT_TILE)

    # Batch tile from the VMEM budget.  ~4 live copies of the (tb, tf) block
    # (double-buffered input + output), native dtype.
    block_row_bytes = 4 * tf * itemsize
    tb = max(1, vmem_budget_bytes // block_row_bytes)

    # Keep the grid >= ~4 steps when possible so read/write DMAs overlap
    # across steps and v7x's 2 TensorCores both drive HBM.
    feat_steps = pl.cdiv(feat, tf)
    target_batch_steps = max(1, 4 // feat_steps)
    if target_batch_steps > 1 and batch > _SUBLANE * target_batch_steps:
        tb = min(tb, pl.cdiv(batch, target_batch_steps))

    if tb >= batch:
        tb = batch  # full-extent batch block is always legal
    else:
        tb = max(_SUBLANE, (tb // _SUBLANE) * _SUBLANE)
        tb = min(tb, batch)
    return tb, tf


def drop_path_forward(x, drop_prob=0.0, *, training=False, scale_by_keep=True,
                      key=None, seed=0):
    """Pallas TPU implementation of timm-style drop_path (stochastic depth)."""
    if drop_prob == 0.0 or not training:
        # Identity path: no kernel, no HBM round trip (matches PyTorch early return).
        return x

    keep_prob = 1.0 - drop_prob
    scale_val = (1.0 / keep_prob) if (keep_prob > 0.0 and scale_by_keep) else 1.0

    batch = x.shape[0]
    feat = int(math.prod(x.shape[1:])) if x.ndim > 1 else 1
    x2d = x.reshape(batch, feat)  # lane-dense flat feature axis
    itemsize = jnp.dtype(x.dtype).itemsize

    # Per-sample Bernoulli(keep_prob) mask folded with the 1/keep_prob scale.
    # Host-side jax.random => tile-invariant, reproducible, interpret-safe.
    if key is None:
        key = jax.random.PRNGKey(seed)
    keep = jax.random.bernoulli(key, p=keep_prob, shape=(batch, 1))
    scale = jnp.where(keep, jnp.asarray(scale_val, jnp.float32),
                      jnp.float32(0.0)).astype(x.dtype)

    tb, tf = _choose_tiles(batch, feat, itemsize)
    grid = (pl.cdiv(batch, tb), pl.cdiv(feat, tf))

    out2d = pl.pallas_call(
        _drop_path_kernel,
        out_shape=jax.ShapeDtypeStruct((batch, feat), x.dtype),
        grid_spec=pltpu.PrefetchScalarGridSpec(
            num_scalar_prefetch=0,
            grid=grid,
            in_specs=[
                pl.BlockSpec((tb, 1), lambda b, f: (b, 0)),    # per-sample scale
                pl.BlockSpec((tb, tf), lambda b, f: (b, f)),   # x tile
            ],
            out_specs=pl.BlockSpec((tb, tf), lambda b, f: (b, f)),
        ),
        compiler_params=pltpu.CompilerParams(
            dimension_semantics=("parallel", "parallel"),
            vmem_limit_bytes=_VMEM_LIMIT_BYTES,
        ),
        cost_estimate=pl.CostEstimate(
            flops=batch * feat,
            transcendentals=0,
            bytes_accessed=2 * batch * feat * itemsize + batch * itemsize,
        ),
    )(scale, x2d)

    return out2d.reshape(x.shape)


if __name__ == "__main__":
    key = jax.random.PRNGKey(0)
    x = jax.random.normal(key, (8, 4, 16, 16), dtype=jnp.float32)

    # 1) Eval mode / drop_prob == 0 -> exact identity (PyTorch early return).
    y_eval = drop_path_forward(x, drop_prob=0.2, training=False)
    y_p0 = drop_path_forward(x, drop_prob=0.0, training=True)
    assert bool(jnp.array_equal(y_eval, x)) and bool(jnp.array_equal(y_p0, x))

    # 2) Training path with drop_prob > 0: each sample is either dropped
    #    (all-zero) or passed through scaled by 1/keep_prob.
    drop_prob = 0.25
    keep_prob = 1.0 - drop_prob
    y = drop_path_forward(
        x, drop_prob=drop_prob, training=True, scale_by_keep=True, seed=42
    )
    y = jax.block_until_ready(y)
    assert y.shape == x.shape and y.dtype == x.dtype

    scaled_ref = x * jnp.float32(1.0 / keep_prob)
    for b in range(x.shape[0]):
        row = y[b]
        is_dropped = bool(jnp.all(row == 0.0))
        is_kept = bool(jnp.allclose(row, scaled_ref[b], rtol=1e-6, atol=1e-6))
        assert is_dropped or is_kept, f"sample {b}: not a valid DropPath output"

    # 3) scale_by_keep=False: kept samples pass through unscaled.
    y2 = drop_path_forward(
        x, drop_prob=drop_prob, training=True, scale_by_keep=False, seed=7
    )
    y2 = jax.block_until_ready(y2)
    for b in range(x.shape[0]):
        row = y2[b]
        ok = bool(jnp.all(row == 0.0)) or bool(
            jnp.allclose(row, x[b], rtol=1e-6, atol=1e-6)
        )
        assert ok, f"sample {b}: not a valid DropPath output (unscaled)"

    print("KERNEL_OK")
</pallas_src>

<mosaic_0001>
module attributes {stable_mosaic.version = 11 : i64} {
  func.func @_drop_path_kernel(%arg0: i32, %arg1: i32, %arg2: memref<8x1xf32, #tpu.memory_space<vmem>>, %arg3: memref<8x1024xf32, #tpu.memory_space<vmem>>, %arg4: memref<8x1024xf32, #tpu.memory_space<vmem>>) attributes {dimension_semantics = [#tpu.dimension_semantics<parallel>, #tpu.dimension_semantics<parallel>], iteration_bounds = array<i64: 1, 1>, scalar_prefetch = 0 : i64, scratch_operands = 0 : i64, tpu.core_type = #tpu.core_type<tc>, window_params = [{transform_indices = @transform_0, window_bounds = array<i64: 8, 1>}, {transform_indices = @transform_1, window_bounds = array<i64: 8, 1024>}, {transform_indices = @transform_2, window_bounds = array<i64: 8, 1024>}]} {
    %c0 = arith.constant 0 : index
    %c0_0 = arith.constant 0 : index
    %0 = vector.load %arg3[%c0, %c0_0] : memref<8x1024xf32, #tpu.memory_space<vmem>>, vector<8x1024xf32>
    %c0_1 = arith.constant 0 : index
    %c0_2 = arith.constant 0 : index
    %1 = vector.load %arg2[%c0_1, %c0_2] : memref<8x1xf32, #tpu.memory_space<vmem>>, vector<8x1xf32>
    %2 = vector.broadcast %1 : vector<8x1xf32> to vector<8x1024xf32>
    %3 = arith.mulf %0, %2 : vector<8x1024xf32>
    %c0_3 = arith.constant 0 : index
    %c0_4 = arith.constant 0 : index
    %4 = vector.load %arg4[%c0_3, %c0_4] : memref<8x1024xf32, #tpu.memory_space<vmem>>, vector<8x1024xf32>
    tpu.vector_store %arg4[%c0_3, %c0_4], %3 {strides = array<i32>} : memref<8x1024xf32, #tpu.memory_space<vmem>>, vector<8x1024xf32>,
    return
  }
  func.func @transform_0(%arg0: i32, %arg1: i32) -> (i32, i32) {
    %c0_i32 = arith.constant 0 : i32
    %c0_i32_0 = arith.constant 0 : i32
    return %arg0, %c0_i32 : i32, i32
  }
  func.func @transform_1(%arg0: i32, %arg1: i32) -> (i32, i32) {
    %c0_i32 = arith.constant 0 : i32
    return %arg0, %arg1 : i32, i32
  }
  func.func @transform_2(%arg0: i32, %arg1: i32) -> (i32, i32) {
    %c0_i32 = arith.constant 0 : i32
    return %arg0, %arg1 : i32, i32
  }
}

</mosaic_0001>

<llo_original>
// kernel: tpu_custom_call.1
$region0: #{tpu_custom_call.1}
  #allocation0 [shape = 'u32[]', space=smem, size = 0x4, offset = 0x4, fixed_abs, tag = 'smem constant byte address 0x4 - core index']
  #allocation1 [shape = 'u32[144,128]{1,0:T(1,128)}', space=vmem, size = 0x12000, scoped, tag = 'internal scratch']
  %s0 = inlined_call_operand.vmem [shape: f32[8,1], index: 0, kind: input, shape index: {}]
  %s1 = inlined_call_operand.hbm [shape: f32[8,1024], index: 1, kind: input, shape index: {}]
  %s2 = inlined_call_operand.hbm [shape: f32[8,1024], index: 2, kind: output, shape index: {}]
  %s3 = sld [smem:[#allocation0]]
  $region22: #{tpu_custom_call.1} parent=0
    _
  %s5 = ssub.s32 1, %s3
  %s6 = scalar_select 0, %s5, %s3
  $region1: #{tpu_custom_call.1} parent=0
    #allocation2 [shape = 'u8[32768]{0}', space=vmem, size = 0x8000, scoped, tag = 'input window, operand 1, single buffered']
    #allocation3 [shape = 's32[1]{0}', space=sflag, size = 0x4, scoped, tag = 'scoped memory for tpu_custom_call.1']
    #allocation4 [shape = 's32[1]{0}', space=sflag, size = 0x4, scoped, tag = 'scoped memory for tpu_custom_call.1']
    #allocation5 [shape = 'u8[32768]{0}', space=vmem, size = 0x8000, scoped, tag = 'output window, operand 0, single buffered']
    %7 = vsyncpa [#allocation3], 0
    %8 = vsyncpa [#allocation4], 0
    // Predicated region
    $region2: #{tpu_custom_call.1} parent=1 // pred_check
      _
    $region3: #{tpu_custom_call.1} parent=1 // pred_check_branch
      %10 = sbr.rel (0) target = $region5
    $region4: #{tpu_custom_call.1} parent=1 // pred_region
      _
    $region5: #{tpu_custom_call.1} parent=1 // pred_fallthru
      _
    // Predicated region
    $region6: #{tpu_custom_call.1} parent=1 // pred_check
      _
    $region7: #{tpu_custom_call.1} parent=1 // pred_check_branch
      %12 = sbr.rel (0) target = $region9
    $region8: #{tpu_custom_call.1} parent=1 // pred_region
      %s14 = ssub.s32 1024, 1024
      %15 = vsyncadd [#allocation3], %s14
      %s17 = sshll.u32 [#allocation2], 4
      %s18 = int_to_ptr.vmem [resolvable:$true] %s17
      %20 = dma.hbm_to_vmem [thread:$0]  %s1, 1024, %s18, [#allocation3]
    $region9: #{tpu_custom_call.1} parent=1 // pred_fallthru
      _
    // Predicated region
    $region10: #{tpu_custom_call.1} parent=1 // pred_check
      _
    $region11: #{tpu_custom_call.1} parent=1 // pred_check_branch
      %22 = sbr.rel (0) target = $region13
    $region12: #{tpu_custom_call.1} parent=1 // pred_region
      %23 = dma.done [#allocation3], 1024
    $region13: #{tpu_custom_call.1} parent=1 // pred_fallthru
      _
    %v24 = vld [vmem:[#allocation2] sm:$0xff]
    %v25 = vld [vmem:[#allocation2 + $0x8] sm:$0xff]
    %v26 = vld [vmem:[#allocation2 + $0x10] sm:$0xff]
    %v27 = vld [vmem:[#allocation2 + $0x18] sm:$0xff]
    %v28 = vld [vmem:[#allocation2 + $0x20] sm:$0xff]
    %v29 = vld [vmem:[#allocation2 + $0x28] sm:$0xff]
    %v30 = vld [vmem:[#allocation2 + $0x30] sm:$0xff]
    %v31 = vld [vmem:[#allocation2 + $0x38] sm:$0xff]
    %v32 = vld [vmem:[%s0] sm:$0xff]
    %34 = vset.pattern.permute.xlu0 0
    %35 = vperm.xlu0 %34, %v32
    %v36 = vpop.permute.xlu0 %35
    %v38 = vmul.f32 %v24, %v36
    %v39 = vmul.f32 %v25, %v36
    %v40 = vmul.f32 %v26, %v36
    %v41 = vmul.f32 %v27, %v36
    %v42 = vmul.f32 %v28, %v36
    %v43 = vmul.f32 %v29, %v36
    %v44 = vmul.f32 %v30, %v36
    %v45 = vmul.f32 %v31, %v36
    %46 = vst [vmem:[#allocation5] sm:$0xff] %v38
    %47 = vst [vmem:[#allocation5 + $0x8] sm:$0xff] %v39
    %48 = vst [vmem:[#allocation5 + $0x10] sm:$0xff] %v40
    %49 = vst [vmem:[#allocation5 + $0x18] sm:$0xff] %v41
    %50 = vst [vmem:[#allocation5 + $0x20] sm:$0xff] %v42
    %51 = vst [vmem:[#allocation5 + $0x28] sm:$0xff] %v43
    %52 = vst [vmem:[#allocation5 + $0x30] sm:$0xff] %v44
    %53 = vst [vmem:[#allocation5 + $0x38] sm:$0xff] %v45
    // Predicated region
    $region14: #{tpu_custom_call.1} parent=1 // pred_check
      _
    $region15: #{tpu_custom_call.1} parent=1 // pred_check_branch
      %55 = sbr.rel (0) target = $region17
    $region16: #{tpu_custom_call.1} parent=1 // pred_region
      %s57 = ssub.s32 1024, 1024
      %58 = vsyncadd [#allocation4], %s57
      %s60 = sshll.u32 [#allocation5], 4
      %s61 = int_to_ptr.vmem [resolvable:$true] %s60
      %63 = dma.vmem_to_hbm [thread:$0]  %s61, 1024, %s2, [#allocation4]
    $region17: #{tpu_custom_call.1} parent=1 // pred_fallthru
      _
    // Predicated region
    $region18: #{tpu_custom_call.1} parent=1 // pred_check
      _
    $region19: #{tpu_custom_call.1} parent=1 // pred_check_branch
      %65 = sbr.rel (0) target = $region21
    $region20: #{tpu_custom_call.1} parent=1 // pred_region
      %66 = dma.done [#allocation4], 1024
    $region21: #{tpu_custom_call.1} parent=1 // pred_fallthru
      _
    %67 = vsyncpa [#allocation3], 1
    %68 = vsyncpa [#allocation4], 1

</llo_original>
